<compile_context>
chip_gen: v6e
topology: v6e:2x2x1
jax: 0.10.0
libtpu: 0.0.40
codegen_flags: <defaults>
</compile_context>

<pallas_src>
import jax
import jax.numpy as jnp
from jax import lax
from jax.experimental import pallas as pl
from jax.experimental.pallas import tpu as pltpu


def _round_up(x, m):
    return (x + m - 1) // m * m


def _cdiv(a, b):
    return -(-a // b)


def _vmem_capacity_bytes():
    """Physical per-core VMEM capacity (conservative fallback = v7x 64 MiB)."""
    try:
        return int(pltpu.get_tpu_info().vmem_capacity_bytes)
    except Exception:
        return 64 * 1024 * 1024


# --------------------------------------------------------------------------
# Kernels
# --------------------------------------------------------------------------
def _highway_resident_kernel(x_ref, w_ref, b_ref, o_ref):
    """grid = (M_tiles,).  All-layer fused weights are VMEM-resident.

    x_ref : (TM, Hp)        input row tile
    w_ref : (L, Hp, 2*Hp)   fused [transform | gate] weights (constant block)
    b_ref : (L, 1, 2*Hp)    fused biases, f32 (constant block)
    o_ref : (TM, Hp)        output row tile (written once)
    """
    hp = x_ref.shape[1]
    num_layers = w_ref.shape[0]
    x0 = x_ref[...].astype(jnp.float32)

    def layer_body(l, xv):
        w = w_ref[l]                                    # (Hp, 2Hp)
        b = b_ref[l]                                    # (1, 2Hp) f32
        # Single fused MXU matmul for transform + gate, f32 accumulation.
        y = jnp.dot(xv.astype(w.dtype), w,
                    preferred_element_type=jnp.float32) + b
        t = jnp.maximum(y[:, :hp], 0.0)                 # ReLU(transform)
        # sigmoid via tanh: one EUP transcendental instead of exp + recip.
        g = 0.5 * jnp.tanh(0.5 * y[:, hp:]) + 0.5
        return xv + g * (t - xv)                        # == g*t + (1-g)*x

    x_final = lax.fori_loop(0, num_layers, layer_body, x0, unroll=True)
    o_ref[...] = x_final.astype(o_ref.dtype)


def _highway_streamed_kernel(x_ref, w_ref, b_ref, o_ref, acc_ref):
    """Fallback: grid = (M_tiles, L), weights streamed one layer per step.

    x_ref  : (TM, Hp)       acc_ref : (TM, Hp) f32 carry
    w_ref  : (1, Hp, 2*Hp)  b_ref   : (1, 1, 2*Hp)
    o_ref  : (TM, Hp)       output resident across layers, written at last.
    """
    layer = pl.program_id(1)
    last = pl.num_programs(1) - 1
    hp = x_ref.shape[1]

    @pl.when(layer == 0)
    def _():
        acc_ref[...] = x_ref[...].astype(jnp.float32)

    xv = acc_ref[...]
    w = w_ref[0]
    b = b_ref[0]
    y = jnp.dot(xv.astype(w.dtype), w, preferred_element_type=jnp.float32) + b
    t = jnp.maximum(y[:, :hp], 0.0)
    g = 0.5 * jnp.tanh(0.5 * y[:, hp:]) + 0.5
    new_x = xv + g * (t - xv)

    @pl.when(layer < last)
    def _():
        acc_ref[...] = new_x

    @pl.when(layer == last)
    def _():
        o_ref[...] = new_x.astype(o_ref.dtype)


# --------------------------------------------------------------------------
# Wrappers
# --------------------------------------------------------------------------
def prepare_highway_weights(wt, bt, wg, bg, *, matmul_dtype=jnp.bfloat16):
    """Pad + fuse weights/biases ONCE (hoist out of the per-call path).

    wt, wg : (L, H, H) in (in, out) layout.   bt, bg : (L, 1, H) or (L, H).
    Returns (w_cat, b_cat): (L, Hp, 2*Hp) and (L, 1, 2*Hp), Hp = round_up(H,128).
    Transform occupies out-columns [0, H), gate occupies [Hp, Hp+H).  Zero
    padding keeps padded activation lanes exactly zero through every layer
    (t = 0, g = 0.5, x = 0 -> new_x = 0).
    bf16 operands are recommended on all TPU generations (incl. v5e): the MXU
    is natively bf16 and it halves weight bytes; accumulation stays f32.
    """
    L, H, _ = wt.shape
    Hp = _round_up(H, 128)
    bt = bt.reshape(L, 1, H)
    bg = bg.reshape(L, 1, H)
    w_cat = jnp.zeros((L, Hp, 2 * Hp), matmul_dtype)
    w_cat = w_cat.at[:, :H, :H].set(wt.astype(matmul_dtype))
    w_cat = w_cat.at[:, :H, Hp:Hp + H].set(wg.astype(matmul_dtype))
    b_cat = jnp.zeros((L, 1, 2 * Hp), jnp.float32)
    b_cat = b_cat.at[:, :, :H].set(bt.astype(jnp.float32))
    b_cat = b_cat.at[:, :, Hp:Hp + H].set(bg.astype(jnp.float32))
    return w_cat, b_cat


def highway_encoder_prepared(x, w_cat, b_cat, *, tm_max=1024):
    """Highway forward with pre-fused weights.  x: (B, S, H)."""
    B, S, H = x.shape
    L, Hp, Hp2 = w_cat.shape
    assert Hp2 == 2 * Hp and Hp == _round_up(H, 128)
    M = B * S

    x_bytes = jnp.dtype(x.dtype).itemsize
    w_bytes = jnp.dtype(w_cat.dtype).itemsize

    # ---- row-tile choice ---------------------------------------------------
    tm = min(tm_max, _round_up(M, 8))
    if _cdiv(M, tm) == 1 and M > 8:
        # Keep >= 2 row tiles so v7x megacore can shard the parallel axis.
        tm = _round_up(_cdiv(M, 2), 8)
    Mp = _round_up(M, tm)

    # ---- VMEM budgeting (clamped to physical capacity) ----------------------
    vmem_cap = _vmem_capacity_bytes()
    budget = vmem_cap - 4 * 1024 * 1024          # headroom for compiler use

    weight_resident_bytes = 2 * L * (Hp * 2 * Hp * w_bytes + 2 * Hp * 4)
    weight_streamed_bytes = 2 * (Hp * 2 * Hp * w_bytes + 2 * Hp * 4)

    def act_bytes(t):  # x double-buffered + out double-buffered
        return 2 * t * Hp * x_bytes + 2 * t * Hp * x_bytes

    use_resident = weight_resident_bytes + act_bytes(tm) <= budget
    if not use_resident:
        # TODO(synk): for very large Hp on v7x also N-tile the 2*Hp output
        # columns; here we just shrink the row tile until streaming fits.
        while tm > 8 and (weight_streamed_bytes + act_bytes(tm)
                          + tm * Hp * 4) > budget:
            tm = max(8, _round_up(tm // 2, 8))
        Mp = _round_up(M, tm)

    # ---- activation padding: skipped entirely in the aligned case -----------
    aligned = (H == Hp) and (M == Mp)
    if aligned:
        x2d = x.reshape(M, H)
    else:
        x2d = jnp.zeros((Mp, Hp), x.dtype).at[:M, :H].set(x.reshape(M, H))

    n_tiles = Mp // tm

    if use_resident:
        vmem_need = weight_resident_bytes + act_bytes(tm)
        vmem_limit = min(budget, max(int(vmem_need * 5 // 4), 32 * 1024 * 1024))
        out = pl.pallas_call(
            _highway_resident_kernel,
            out_shape=jax.ShapeDtypeStruct((Mp, Hp), x.dtype),
            grid_spec=pltpu.PrefetchScalarGridSpec(
                num_scalar_prefetch=0,
                grid=(n_tiles,),
                in_specs=[
                    pl.BlockSpec((tm, Hp), lambda i: (i, 0)),           # x rows
                    pl.BlockSpec((L, Hp, 2 * Hp), lambda i: (0, 0, 0)),  # W (resident)
                    pl.BlockSpec((L, 1, 2 * Hp), lambda i: (0, 0, 0)),   # b (resident)
                ],
                out_specs=pl.BlockSpec((tm, Hp), lambda i: (i, 0)),
            ),
            compiler_params=pltpu.CompilerParams(
                dimension_semantics=("parallel",),
                vmem_limit_bytes=vmem_limit,
            ),
        )(x2d, w_cat, b_cat)
    else:
        vmem_need = weight_streamed_bytes + act_bytes(tm) + tm * Hp * 4
        vmem_limit = min(budget, max(int(vmem_need * 5 // 4), 32 * 1024 * 1024))
        out = pl.pallas_call(
            _highway_streamed_kernel,
            out_shape=jax.ShapeDtypeStruct((Mp, Hp), x.dtype),
            grid_spec=pltpu.PrefetchScalarGridSpec(
                num_scalar_prefetch=0,
                grid=(n_tiles, L),
                in_specs=[
                    pl.BlockSpec((tm, Hp), lambda i, l: (i, 0)),
                    pl.BlockSpec((1, Hp, 2 * Hp), lambda i, l: (l, 0, 0)),
                    pl.BlockSpec((1, 1, 2 * Hp), lambda i, l: (l, 0, 0)),
                ],
                out_specs=pl.BlockSpec((tm, Hp), lambda i, l: (i, 0)),
                scratch_shapes=[pltpu.VMEM((tm, Hp), jnp.float32)],
            ),
            compiler_params=pltpu.CompilerParams(
                dimension_semantics=("parallel", "arbitrary"),
                vmem_limit_bytes=vmem_limit,
            ),
        )(x2d, w_cat, b_cat)

    if aligned:
        return out.reshape(B, S, H)
    return out[:M, :H].reshape(B, S, H)


def highway_encoder(x, wt, bt, wg, bg, *, matmul_dtype=jnp.bfloat16, tm_max=1024):
    """Convenience wrapper: fuses weights then runs the kernel.

    For repeated calls, hoist prepare_highway_weights() to init time and call
    highway_encoder_prepared() directly.
    """
    w_cat, b_cat = prepare_highway_weights(wt, bt, wg, bg,
                                           matmul_dtype=matmul_dtype)
    return highway_encoder_prepared(x, w_cat, b_cat, tm_max=tm_max)


if __name__ == "__main__":
    num_layers = 2
    hidden_size = 32
    batch, seq = 2, 8

    key = jax.random.PRNGKey(0)
    kx, kwt, kbt, kwg, kbg = jax.random.split(key, 5)

    x = jax.random.normal(kx, (batch, seq, hidden_size), dtype=jnp.float32)

    # nn.Linear-style init; weights stored pre-transposed as (L, in, out).
    bound = 1.0 / (hidden_size ** 0.5)
    wt = jax.random.uniform(kwt, (num_layers, hidden_size, hidden_size),
                            minval=-bound, maxval=bound, dtype=jnp.float32)
    bt = jax.random.uniform(kbt, (num_layers, 1, hidden_size),
                            minval=-bound, maxval=bound, dtype=jnp.float32)
    wg = jax.random.uniform(kwg, (num_layers, hidden_size, hidden_size),
                            minval=-bound, maxval=bound, dtype=jnp.float32)
    bg = jax.random.uniform(kbg, (num_layers, 1, hidden_size),
                            minval=-bound, maxval=bound, dtype=jnp.float32)

    # Pure-JAX reference matching the PyTorch forward.
    ref = x
    for l in range(num_layers):
        g = jax.nn.sigmoid(ref @ wg[l] + bg[l, 0])
        t = jax.nn.relu(ref @ wt[l] + bt[l, 0])
        ref = g * t + (1.0 - g) * ref

    # Exact path: f32 MXU operands, weight prep hoisted out of the call.
    w_cat32, b_cat32 = prepare_highway_weights(wt, bt, wg, bg,
                                               matmul_dtype=jnp.float32)
    out_f32 = jax.block_until_ready(
        highway_encoder_prepared(x, w_cat32, b_cat32))
    assert out_f32.shape == x.shape
    assert jnp.allclose(out_f32, ref, atol=1e-4, rtol=1e-4), "f32 kernel mismatch"

    # Fast path: bf16 MXU operands (recommended on v5e/v6e/v7x), f32 accumulate.
    out_bf16 = jax.block_until_ready(
        highway_encoder(x, wt, bt, wg, bg, matmul_dtype=jnp.bfloat16))
    assert jnp.allclose(out_bf16, ref, atol=5e-2, rtol=5e-2), "bf16 kernel mismatch"

    print("KERNEL_OK")
</pallas_src>

<mosaic_0001>
module attributes {stable_mosaic.version = 11 : i64} {
  func.func @_highway_resident_kernel(%arg0: i32, %arg1: memref<8x128xf32, #tpu.memory_space<vmem>>, %arg2: memref<2x128x256xf32, #tpu.memory_space<vmem>>, %arg3: memref<2x1x256xf32, #tpu.memory_space<vmem>>, %arg4: memref<8x128xf32, #tpu.memory_space<vmem>>) attributes {dimension_semantics = [#tpu.dimension_semantics<parallel>], iteration_bounds = array<i64: 2>, scalar_prefetch = 0 : i64, scratch_operands = 0 : i64, tpu.core_type = #tpu.core_type<tc>, window_params = [{transform_indices = @transform_0, window_bounds = array<i64: 8, 128>}, {pipeline_mode = #tpu.pipeline_mode<synchronous>, transform_indices = @transform_1, window_bounds = array<i64: 2, 128, 256>}, {pipeline_mode = #tpu.pipeline_mode<synchronous>, transform_indices = @transform_2, window_bounds = array<i64: 2, 1, 256>}, {transform_indices = @transform_3, window_bounds = array<i64: 8, 128>}]} {
    %c0 = arith.constant 0 : index
    %c0_0 = arith.constant 0 : index
    %0 = vector.load %arg1[%c0, %c0_0] : memref<8x128xf32, #tpu.memory_space<vmem>>, vector<8x128xf32>
    %c0_i32 = arith.constant 0 : i32
    %1 = arith.index_cast %c0_i32 : i32 to index
    %c0_1 = arith.constant 0 : index
    %c0_2 = arith.constant 0 : index
    %2 = vector.load %arg2[%1, %c0_1, %c0_2] : memref<2x128x256xf32, #tpu.memory_space<vmem>>, vector<1x128x256xf32>
    %3 = vector.shape_cast %2 : vector<1x128x256xf32> to vector<128x256xf32>
    %4 = arith.index_cast %c0_i32 : i32 to index
    %c0_3 = arith.constant 0 : index
    %c0_4 = arith.constant 0 : index
    %5 = vector.load %arg3[%4, %c0_3, %c0_4] : memref<2x1x256xf32, #tpu.memory_space<vmem>>, vector<1x1x256xf32>
    %6 = vector.shape_cast %5 : vector<1x1x256xf32> to vector<1x256xf32>
    %cst = arith.constant dense<0.000000e+00> : vector<8x256xf32>
    %7 = tpu.matmul %0, %3, %cst {dimension_numbers = #tpu.dot_dimension_numbers<[1], [0], [0], [1], [0, 0, 1, 1], [], []>} : vector<8x128xf32>, vector<128x256xf32>, vector<8x256xf32> -> vector<8x256xf32>
    %8 = vector.broadcast %6 : vector<1x256xf32> to vector<8x256xf32>
    %9 = arith.addf %7, %8 : vector<8x256xf32>
    %10 = vector.extract_strided_slice %9 {offsets = [0, 0], sizes = [8, 128], strides = [1, 1]} : vector<8x256xf32> to vector<8x128xf32>
    %cst_5 = arith.constant 0.000000e+00 : f32
    %11 = vector.broadcast %cst_5 : f32 to vector<8x128xf32>
    %12 = arith.maximumf %10, %11 : vector<8x128xf32>
    %13 = vector.extract_strided_slice %9 {offsets = [0, 128], sizes = [8, 128], strides = [1, 1]} : vector<8x256xf32> to vector<8x128xf32>
    %cst_6 = arith.constant 5.000000e-01 : f32
    %14 = vector.broadcast %cst_6 : f32 to vector<8x128xf32>
    %15 = arith.mulf %14, %13 : vector<8x128xf32>
    %16 = math.tanh %15 : vector<8x128xf32>
    %cst_7 = arith.constant 5.000000e-01 : f32
    %17 = vector.broadcast %cst_7 : f32 to vector<8x128xf32>
    %18 = arith.mulf %17, %16 : vector<8x128xf32>
    %cst_8 = arith.constant 5.000000e-01 : f32
    %19 = vector.broadcast %cst_8 : f32 to vector<8x128xf32>
    %20 = arith.addf %18, %19 : vector<8x128xf32>
    %21 = arith.subf %12, %0 : vector<8x128xf32>
    %22 = arith.mulf %20, %21 : vector<8x128xf32>
    %23 = arith.addf %0, %22 : vector<8x128xf32>
    %c1_i32 = arith.constant 1 : i32
    %24 = arith.index_cast %c1_i32 : i32 to index
    %c0_9 = arith.constant 0 : index
    %c0_10 = arith.constant 0 : index
    %25 = vector.load %arg2[%24, %c0_9, %c0_10] : memref<2x128x256xf32, #tpu.memory_space<vmem>>, vector<1x128x256xf32>
    %26 = vector.shape_cast %25 : vector<1x128x256xf32> to vector<128x256xf32>
    %27 = arith.index_cast %c1_i32 : i32 to index
    %c0_11 = arith.constant 0 : index
    %c0_12 = arith.constant 0 : index
    %28 = vector.load %arg3[%27, %c0_11, %c0_12] : memref<2x1x256xf32, #tpu.memory_space<vmem>>, vector<1x1x256xf32>
    %29 = vector.shape_cast %28 : vector<1x1x256xf32> to vector<1x256xf32>
    %cst_13 = arith.constant dense<0.000000e+00> : vector<8x256xf32>
    %30 = tpu.matmul %23, %26, %cst_13 {dimension_numbers = #tpu.dot_dimension_numbers<[1], [0], [0], [1], [0, 0, 1, 1], [], []>} : vector<8x128xf32>, vector<128x256xf32>, vector<8x256xf32> -> vector<8x256xf32>
    %31 = vector.broadcast %29 : vector<1x256xf32> to vector<8x256xf32>
    %32 = arith.addf %30, %31 : vector<8x256xf32>
    %33 = vector.extract_strided_slice %32 {offsets = [0, 0], sizes = [8, 128], strides = [1, 1]} : vector<8x256xf32> to vector<8x128xf32>
    %cst_14 = arith.constant 0.000000e+00 : f32
    %34 = vector.broadcast %cst_14 : f32 to vector<8x128xf32>
    %35 = arith.maximumf %33, %34 : vector<8x128xf32>
    %36 = vector.extract_strided_slice %32 {offsets = [0, 128], sizes = [8, 128], strides = [1, 1]} : vector<8x256xf32> to vector<8x128xf32>
    %cst_15 = arith.constant 5.000000e-01 : f32
    %37 = vector.broadcast %cst_15 : f32 to vector<8x128xf32>
    %38 = arith.mulf %37, %36 : vector<8x128xf32>
    %39 = math.tanh %38 : vector<8x128xf32>
    %cst_16 = arith.constant 5.000000e-01 : f32
    %40 = vector.broadcast %cst_16 : f32 to vector<8x128xf32>
    %41 = arith.mulf %40, %39 : vector<8x128xf32>
    %cst_17 = arith.constant 5.000000e-01 : f32
    %42 = vector.broadcast %cst_17 : f32 to vector<8x128xf32>
    %43 = arith.addf %41, %42 : vector<8x128xf32>
    %44 = arith.subf %35, %23 : vector<8x128xf32>
    %45 = arith.mulf %43, %44 : vector<8x128xf32>
    %46 = arith.addf %23, %45 : vector<8x128xf32>
    %c2_i32 = arith.constant 2 : i32
    %c0_18 = arith.constant 0 : index
    %c0_19 = arith.constant 0 : index
    %47 = vector.load %arg4[%c0_18, %c0_19] : memref<8x128xf32, #tpu.memory_space<vmem>>, vector<8x128xf32>
    tpu.vector_store %arg4[%c0_18, %c0_19], %46 {strides = array<i32>} : memref<8x128xf32, #tpu.memory_space<vmem>>, vector<8x128xf32>,
    return
  }
  func.func @transform_0(%arg0: i32) -> (i32, i32) {
    %c0_i32 = arith.constant 0 : i32
    %c0_i32_0 = arith.constant 0 : i32
    return %arg0, %c0_i32 : i32, i32
  }
  func.func @transform_1(%arg0: i32) -> (i32, i32, i32) {
    %c0_i32 = arith.constant 0 : i32
    %c0_i32_0 = arith.constant 0 : i32
    %c0_i32_1 = arith.constant 0 : i32
    %c0_i32_2 = arith.constant 0 : i32
    return %c0_i32, %c0_i32_0, %c0_i32_1 : i32, i32, i32
  }
  func.func @transform_2(%arg0: i32) -> (i32, i32, i32) {
    %c0_i32 = arith.constant 0 : i32
    %c0_i32_0 = arith.constant 0 : i32
    %c0_i32_1 = arith.constant 0 : i32
    %c0_i32_2 = arith.constant 0 : i32
    return %c0_i32, %c0_i32_0, %c0_i32_1 : i32, i32, i32
  }
  func.func @transform_3(%arg0: i32) -> (i32, i32) {
    %c0_i32 = arith.constant 0 : i32
    %c0_i32_0 = arith.constant 0 : i32
    return %arg0, %c0_i32 : i32, i32
  }
}

</mosaic_0001>

<llo_original>
// kernel: tpu_custom_call.1
$region0: #{tpu_custom_call.1}
  #allocation0 [shape = 'u32[]', space=smem, size = 0x4, offset = 0x4, fixed_abs, tag = 'smem constant byte address 0x4 - core index']
  #allocation1 [shape = 'u32[144,128]{1,0:T(1,128)}', space=vmem, size = 0x12000, scoped, tag = 'internal scratch']
  %s0 = inlined_call_operand.hbm [shape: f32[16,128], index: 0, kind: input, shape index: {}]
  %s1 = inlined_call_operand.hbm [shape: f32[2,128,256], index: 1, kind: input, shape index: {}]
  %s2 = inlined_call_operand.hbm [shape: f32[2,1,256], index: 2, kind: input, shape index: {}]
  %s3 = inlined_call_operand.hbm [shape: f32[16,128], index: 3, kind: output, shape index: {}]
  %s4 = sld [smem:[#allocation0]]
  $region57: #{tpu_custom_call.1} parent=0
    _
  %s6 = ssub.s32 1, %s4
  %s7 = scalar_select 0, %s6, %s4
  $region1: #{tpu_custom_call.1} parent=0
    #allocation2 [shape = 'u8[8192]{0}', space=vmem, size = 0x2000, scoped, tag = 'input window, operand 0']
    #allocation3 [shape = 's32[2]{0}', space=sflag, size = 0x8, scoped, tag = 'scoped memory for tpu_custom_call.1']
    #allocation4 [shape = 's32[2]{0}', space=sflag, size = 0x8, scoped, tag = 'scoped memory for tpu_custom_call.1']
    #allocation5 [shape = 'u8[262144]{0}', space=vmem, size = 0x40000, scoped, tag = 'input window, operand 1, single buffered']
    #allocation6 [shape = 's32[1]{0}', space=sflag, size = 0x4, scoped, tag = 'scoped memory for tpu_custom_call.1']
    #allocation7 [shape = 'u8[2048]{0}', space=vmem, size = 0x800, scoped, tag = 'input window, operand 2, single buffered']
    #allocation8 [shape = 'u8[8192]{0}', space=vmem, size = 0x2000, scoped, tag = 'output window, operand 0']
    %8 = vsyncpa [#allocation3], 0
    %s9 = scalar_lea.sflag [#allocation3], 1
    %10 = vsyncpa %s9, 0
    %11 = vsyncpa [#allocation6], 0
    %12 = vsyncpa [#allocation4], 0
    %s13 = scalar_lea.sflag [#allocation4], 1
    %14 = vsyncpa %s13, 0
    loop: start=0, step=1, limit=4
    $region2: #{tpu_custom_call.1} parent=1 // loop_pre_header
      _
    $region3: #{tpu_custom_call.1} parent=1 // loop_header
      %s16 = sphi 0, %s20
      %p17 = scmp.ge.s32.totalorder %s16, 4
      %s26 = sphi 0, %s28
      %s29 = sphi 0, %s26
      %s30 = sphi 0, %s29
      %s46 = sphi 0, %s30
      %s50 = sphi 0, %s50
      %s52 = sphi 0, %s50
      %s53 = sphi 0, %s52
      %s67 = sphi 0, %s53
      %s71 = sphi 0, %s71
      %s73 = sphi 0, %s71
      %s74 = sphi 0, %s73
      %s88 = sphi 0, %s74
      %s94 = sphi 0, %s96
      %s97 = sphi 0, %s94
      %s98 = sphi 0, %s97
      %s114 = sphi 0, %s98
    $region4: #{tpu_custom_call.1} parent=1 // loop_header_branch
      %19 = sbr.rel (%p17) target = $region8
    $region5: #{tpu_custom_call.1} parent=1 // loop_body
      %s21 = ssub.s32 %s16, 1
      %s22 = ssub.s32 %s16, 2
      %s23 = sadd.s32 %s16, 1
      %s24 = ssub.s32 %s16, %s23
      %p25 = scmp.eq.s32.totalorder %s24, 0
      %s27 = sadd.s32 %s26, 1
      %s28 = scalar_select %p25, %s26, %s27
      %p31 = pneg %p25
      %p32 = scmp.eq.s32.totalorder %s16, 1
      %p33 = por %p31, %p32
      %p34 = scmp.ne.s32.totalorder %s26, %s29
      %p35 = scmp.eq.s32.totalorder %s16, 0
      %p36 = por %p34, %p35
      %p37 = scmp.ne.s32.totalorder %s26, %s29
      %p38 = scmp.eq.s32.totalorder %s21, 1
      %p39 = por %p37, %p38
      %p40 = scmp.ne.s32.totalorder %s29, %s30
      %p41 = scmp.eq.s32.totalorder %s21, 0
      %p42 = por %p40, %p41
      %p43 = scmp.ne.s32.totalorder %s29, %s30
      %p44 = scmp.eq.s32.totalorder %s22, 1
      %p45 = por %p43, %p44
      %p47 = scmp.ne.s32.totalorder %s30, %s46
      %p48 = scmp.eq.s32.totalorder %s22, 0
      %p49 = por %p47, %p48
      %s51 = sadd.s32 %s50, 1
      %p54 = scmp.eq.s32.totalorder %s16, 1
      %p55 = scmp.ne.s32.totalorder %s50, %s52
      %p56 = scmp.eq.s32.totalorder %s16, 0
      %p57 = por %p55, %p56
      %p58 = scmp.ne.s32.totalorder %s50, %s52
      %p59 = scmp.eq.s32.totalorder %s21, 1
      %p60 = por %p58, %p59
      %p61 = scmp.ne.s32.totalorder %s52, %s53
      %p62 = scmp.eq.s32.totalorder %s21, 0
      %p63 = por %p61, %p62
      %p64 = scmp.ne.s32.totalorder %s52, %s53
      %p65 = scmp.eq.s32.totalorder %s22, 1
      %p66 = por %p64, %p65
      %p68 = scmp.ne.s32.totalorder %s53, %s67
      %p69 = scmp.eq.s32.totalorder %s22, 0
      %p70 = por %p68, %p69
      %s72 = sadd.s32 %s71, 1
      %p75 = scmp.eq.s32.totalorder %s16, 1
      %p76 = scmp.ne.s32.totalorder %s71, %s73
      %p77 = scmp.eq.s32.totalorder %s16, 0
      %p78 = por %p76, %p77
      %p79 = scmp.ne.s32.totalorder %s71, %s73
      %p80 = scmp.eq.s32.totalorder %s21, 1
      %p81 = por %p79, %p80
      %p82 = scmp.ne.s32.totalorder %s73, %s74
      %p83 = scmp.eq.s32.totalorder %s21, 0
      %p84 = por %p82, %p83
      %p85 = scmp.ne.s32.totalorder %s73, %s74
      %p86 = scmp.eq.s32.totalorder %s22, 1
      %p87 = por %p85, %p86
      %p89 = scmp.ne.s32.totalorder %s74, %s88
      %p90 = scmp.eq.s32.totalorder %s22, 0
      %p91 = por %p89, %p90
      %s92 = ssub.s32 %s16, %s23
      %p93 = scmp.eq.s32.totalorder %s92, 0
      %s95 = sadd.s32 %s94, 1
      %s96 = scalar_select %p93, %s94, %s95
      %p99 = pneg %p93
      %p100 = scmp.eq.s32.totalorder %s16, 1
      %p101 = por %p99, %p100
      %p102 = scmp.ne.s32.totalorder %s94, %s97
      %p103 = scmp.eq.s32.totalorder %s16, 0
      %p104 = por %p102, %p103
      %p105 = scmp.ne.s32.totalorder %s94, %s97
      %p106 = scmp.eq.s32.totalorder %s21, 1
      %p107 = por %p105, %p106
      %p108 = scmp.ne.s32.totalorder %s97, %s98
      %p109 = scmp.eq.s32.totalorder %s21, 0
      %p110 = por %p108, %p109
      %p111 = scmp.ne.s32.totalorder %s97, %s98
      %p112 = scmp.eq.s32.totalorder %s22, 1
      %p113 = por %p111, %p112
      %p115 = scmp.ne.s32.totalorder %s98, %s114
      %p116 = scmp.eq.s32.totalorder %s22, 0
      %p117 = por %p115, %p116
      %p118 = scmp.le.s32.totalorder 1, %s16
      %p119 = scmp.lt.s32.totalorder %s16, 3
      %p120 = pnand %p118, %p119
      %p121 = pneg %p120
      // Predicated region
      $region9: #{tpu_custom_call.1} parent=5 // pred_check
        _
      $region10: #{tpu_custom_call.1} parent=5 // pred_check_branch
        %123 = sbr.rel (%p120) target = $region12
      $region11: #{tpu_custom_call.1} parent=5 // pred_region
        %s124 = ssub.s32 %s16, 1
        // Predicated region
        $region13: #{tpu_custom_call.1} parent=11 // pred_check
          %p125 = pneg %p63
        $region14: #{tpu_custom_call.1} parent=11 // pred_check_branch
          %127 = sbr.rel (%p125) target = $region16
        $region15: #{tpu_custom_call.1} parent=11 // pred_region
          %s129 = ssub.s32 8192, 8192
          %130 = vsyncadd [#allocation6], %s129
          %s131 = sshll.u32 [#allocation5], 4
          %s132 = int_to_ptr.vmem [resolvable:$true] %s131
          %137 = dma.hbm_to_vmem [thread:$0]  %s1, 8192, %s132, [#allocation6], 256, 256, 16
        $region16: #{tpu_custom_call.1} parent=11 // pred_fallthru
          _
        // Predicated region
        $region17: #{tpu_custom_call.1} parent=11 // pred_check
          %p138 = pneg %p84
        $region18: #{tpu_custom_call.1} parent=11 // pred_check_branch
          %140 = sbr.rel (%p138) target = $region20
        $region19: #{tpu_custom_call.1} parent=11 // pred_region
          %s142 = ssub.s32 64, 64
          %143 = vsyncadd [#allocation6], %s142
          %s144 = sshll.u32 [#allocation7], 4
          %s145 = int_to_ptr.vmem [resolvable:$true] %s144
          %150 = dma.hbm_to_vmem [thread:$0]  %s2, 64, %s145, [#allocation6], 32, 32, 2
        $region20: #{tpu_custom_call.1} parent=11 // pred_fallthru
          _
      $region12: #{tpu_custom_call.1} parent=5 // pred_fallthru
        _
      %p151 = scmp.lt.s32.totalorder %s16, 2
      // Predicated region
      $region21: #{tpu_custom_call.1} parent=5 // pred_check
        %p152 = pneg %p151
      $region22: #{tpu_custom_call.1} parent=5 // pred_check_branch
        %154 = sbr.rel (%p152) target = $region24
      $region23: #{tpu_custom_call.1} parent=5 // pred_region
        // Predicated region
        $region25: #{tpu_custom_call.1} parent=23 // pred_check
          %p155 = pneg %p36
        $region26: #{tpu_custom_call.1} parent=23 // pred_check_branch
          %157 = sbr.rel (%p155) target = $region28
        $region27: #{tpu_custom_call.1} parent=23 // pred_region
          %s158 = sand.u32 %s26, 1
          %s159 = scalar_lea.sflag [#allocation3], %s158
          %s160 = sand.u32 %s26, 1
          %s161 = smul.addr %s160, 8
          %s162 = scalar_lea.vmem [#allocation2], %s161
          %s164 = ssub.s32 128, 128
          %165 = vsyncadd %s159, %s164
          %s166 = smul.addr %s16, 128
          %s167 = scalar_lea.hbm %s0, %s166
          %s169 = sshll.u32 %s162, 4
          %s170 = int_to_ptr.vmem [resolvable:$true] %s169
          %172 = dma.hbm_to_vmem [thread:$0]  %s167, 128, %s170, %s159
        $region28: #{tpu_custom_call.1} parent=23 // pred_fallthru
          _
      $region24: #{tpu_custom_call.1} parent=5 // pred_fallthru
        _
      %p173 = scmp.le.s32.totalorder 1, %s16
      %p174 = scmp.lt.s32.totalorder %s16, 3
      %p175 = pnand %p173, %p174
      %p176 = pneg %p175
      // Predicated region
      $region29: #{tpu_custom_call.1} parent=5 // pred_check
        _
      $region30: #{tpu_custom_call.1} parent=5 // pred_check_branch
        %178 = sbr.rel (%p175) target = $region32
      $region31: #{tpu_custom_call.1} parent=5 // pred_region
        %s179 = ssub.s32 %s16, 1
        %s180 = sand.u32 %s29, 1
        %s181 = scalar_lea.sflag [#allocation3], %s180
        %s182 = sand.u32 %s29, 1
        %s183 = smul.addr %s182, 8
        %s184 = scalar_lea.vmem [#allocation2], %s183
        // Predicated region
        $region33: #{tpu_custom_call.1} parent=31 // pred_check
          %p185 = pneg %p42
        $region34: #{tpu_custom_call.1} parent=31 // pred_check_branch
          %187 = sbr.rel (%p185) target = $region36
        $region35: #{tpu_custom_call.1} parent=31 // pred_region
          %188 = dma.done %s181, 128
        $region36: #{tpu_custom_call.1} parent=31 // pred_fallthru
          _
        // Predicated region
        $region37: #{tpu_custom_call.1} parent=31 // pred_check
          %p189 = pneg %p63
        $region38: #{tpu_custom_call.1} parent=31 // pred_check_branch
          %191 = sbr.rel (%p189) target = $region40
        $region39: #{tpu_custom_call.1} parent=31 // pred_region
          %192 = dma.done [#allocation6], 8192
        $region40: #{tpu_custom_call.1} parent=31 // pred_fallthru
          _
        // Predicated region
        $region41: #{tpu_custom_call.1} parent=31 // pred_check
          %p193 = pneg %p84
        $region42: #{tpu_custom_call.1} parent=31 // pred_check_branch
          %195 = sbr.rel (%p193) target = $region44
        $region43: #{tpu_custom_call.1} parent=31 // pred_region
          %196 = dma.done [#allocation6], 64
        $region44: #{tpu_custom_call.1} parent=31 // pred_fallthru
          _
        %s197 = sand.u32 %s29, 1
        %s198 = scalar_lea.sflag [#allocation3], %s197
        %s199 = sand.u32 %s29, 1
        %s200 = smul.addr %s199, 8
        %s201 = scalar_lea.vmem [#allocation2], %s200
        %p202 = pneg %p42
        %p203 = pneg %p39
        %p204 = pneg %p63
        %p205 = pneg %p60
        %p206 = pneg %p84
        %p207 = pneg %p81
        %p208 = pneg %p110
        %p209 = pneg %p107
        %s210 = sand.u32 %s97, 1
        %s211 = scalar_lea.sflag [#allocation4], %s210
        %s212 = sand.u32 %s97, 1
        %s213 = smul.addr %s212, 8
        %s214 = scalar_lea.vmem [#allocation8], %s213
        %v215 = vld [vmem:[%s184] sm:$0xff]
        %v216 = vld [vmem:[#allocation5] sm:$0xff]
        %v217 = vld [vmem:[#allocation5 + $0x8] sm:$0xff]
        %v218 = vld [vmem:[#allocation5 + $0x10] sm:$0xff]
        %v219 = vld [vmem:[#allocation5 + $0x18] sm:$0xff]
        %v220 = vld [vmem:[#allocation5 + $0x20] sm:$0xff]
        %v221 = vld [vmem:[#allocation5 + $0x28] sm:$0xff]
        %v222 = vld [vmem:[#allocation5 + $0x30] sm:$0xff]
        %v223 = vld [vmem:[#allocation5 + $0x38] sm:$0xff]
        %v224 = vld [vmem:[#allocation5 + $0x40] sm:$0xff]
        %v225 = vld [vmem:[#allocation5 + $0x48] sm:$0xff]
        %v226 = vld [vmem:[#allocation5 + $0x50] sm:$0xff]
        %v227 = vld [vmem:[#allocation5 + $0x58] sm:$0xff]
        %v228 = vld [vmem:[#allocation5 + $0x60] sm:$0xff]
        %v229 = vld [vmem:[#allocation5 + $0x68] sm:$0xff]
        %v230 = vld [vmem:[#allocation5 + $0x70] sm:$0xff]
        %v231 = vld [vmem:[#allocation5 + $0x78] sm:$0xff]
        %v232 = vld [vmem:[#allocation5 + $0x80] sm:$0xff]
        %v233 = vld [vmem:[#allocation5 + $0x88] sm:$0xff]
        %v234 = vld [vmem:[#allocation5 + $0x90] sm:$0xff]
        %v235 = vld [vmem:[#allocation5 + $0x98] sm:$0xff]
        %v236 = vld [vmem:[#allocation5 + $0xa0] sm:$0xff]
        %v237 = vld [vmem:[#allocation5 + $0xa8] sm:$0xff]
        %v238 = vld [vmem:[#allocation5 + $0xb0] sm:$0xff]
        %v239 = vld [vmem:[#allocation5 + $0xb8] sm:$0xff]
        %v240 = vld [vmem:[#allocation5 + $0xc0] sm:$0xff]
        %v241 = vld [vmem:[#allocation5 + $0xc8] sm:$0xff]
        %v242 = vld [vmem:[#allocation5 + $0xd0] sm:$0xff]
        %v243 = vld [vmem:[#allocation5 + $0xd8] sm:$0xff]
        %v244 = vld [vmem:[#allocation5 + $0xe0] sm:$0xff]
        %v245 = vld [vmem:[#allocation5 + $0xe8] sm:$0xff]
        %v246 = vld [vmem:[#allocation5 + $0xf0] sm:$0xff]
        %v247 = vld [vmem:[#allocation5 + $0xf8] sm:$0xff]
        %v248 = vld [vmem:[#allocation7] sm:$0x3]
        %v250 = vlaneseq
        %v251 = vshrl.u32 %v250, 7
        %v252 = vsub.s32 0, %v251
        %v253 = vrot.slane %v248, %v252
        %v254 = vlaneseq
        %v255 = vshrl.u32 %v254, 7
        %v256 = vsub.s32 1, %v255
        %v257 = vrot.slane %v248, %v256
        %260 = vmatprep.subr.mxu0 %v247
        %261 = vmatpush1.msra.mxu0 %v246
        %262 = vmatprep.subr.mxu0 %v245
        %263 = vmatpush1.msra.mxu0 %v244
        %264 = vmatprep.subr.mxu0 %v243
        %265 = vmatpush1.msra.mxu0 %v242
        %266 = vmatprep.subr.mxu0 %v241
        %267 = vmatpush1.msra.mxu0 %v240
        %268 = vmatprep.subr.mxu0 %v239
        %269 = vmatpush1.msra.mxu0 %v238
        %270 = vmatprep.subr.mxu0 %v237
        %271 = vmatpush1.msra.mxu0 %v236
        %272 = vmatprep.subr.mxu0 %v235
        %273 = vmatpush1.msra.mxu0 %v234
        %274 = vmatprep.subr.mxu0 %v233
        %275 = vmatpush1.msra.mxu0 %v232
        %276 = vmatprep.subr.mxu0 %v231
        %277 = vmatpush1.msra.mxu0 %v230
        %278 = vmatprep.subr.mxu0 %v229
        %279 = vmatpush1.msra.mxu0 %v228
        %280 = vmatprep.subr.mxu0 %v227
        %281 = vmatpush1.msra.mxu0 %v226
        %282 = vmatprep.subr.mxu0 %v225
        %283 = vmatpush1.msra.mxu0 %v224
        %284 = vmatprep.subr.mxu0 %v223
        %285 = vmatpush1.msra.mxu0 %v222
        %286 = vmatprep.subr.mxu0 %v221
        %287 = vmatpush1.msra.mxu0 %v220
        %288 = vmatprep.subr.mxu0 %v219
        %289 = vmatpush1.msra.mxu0 %v218
        %290 = vmatprep.subr.mxu0 %v217
        %291 = vmatpush1.msra.mxu0 %v216
        %292 = vmatprep.subr.mxu0 0.0
        %293 = vmatpush2.msra.mxu0 0.0
        %294 = vmatprep.subr.mxu0 0.0
        %295 = vmatpush2.msra.mxu0 0.0
        %296 = vmatprep.subr.mxu0 0.0
        %297 = vmatpush2.msra.mxu0 0.0
        %298 = vmatprep.subr.mxu0 0.0
        %299 = vmatpush2.msra.mxu0 0.0
        %300 = vmatprep.subr.mxu0 0.0
        %301 = vmatpush2.msra.mxu0 0.0
        %302 = vmatprep.subr.mxu0 0.0
        %303 = vmatpush2.msra.mxu0 0.0
        %304 = vmatprep.subr.mxu0 0.0
        %305 = vmatpush2.msra.mxu0 0.0
        %306 = vmatprep.subr.mxu0 0.0
        %307 = vmatpush2.msra.mxu0 0.0
        %308 = vmatprep.subr.mxu0 0.0
        %309 = vmatpush2.msra.mxu0 0.0
        %310 = vmatprep.subr.mxu0 0.0
        %311 = vmatpush2.msra.mxu0 0.0
        %312 = vmatprep.subr.mxu0 0.0
        %313 = vmatpush2.msra.mxu0 0.0
        %314 = vmatprep.subr.mxu0 0.0
        %315 = vmatpush2.msra.mxu0 0.0
        %316 = vmatprep.subr.mxu0 0.0
        %317 = vmatpush2.msra.mxu0 0.0
        %318 = vmatprep.subr.mxu0 0.0
        %319 = vmatpush2.msra.mxu0 0.0
        %320 = vmatprep.subr.mxu0 0.0
        %321 = vmatpush2.msra.mxu0 0.0
        %322 = vmatprep.subr.mxu0 0.0
        %323 = vmatpush2.msra.mxu0 0.0
        %324 = vmatprep.mubr.f32.mxu0 0.0
        %325 = vmatmul.mubr.f32.gmra.mxu0 %v215
        %v326 = vpop.f32.mrf.mxu0
        %v327 = vadd.f32 %v253, %v326
        %v328 = vpop.f32.mrf.mxu0
        %v329 = vadd.f32 %v257, %v328
        %330 = vdwg.mxu0
        %v331 = vmax.f32 %v327, 0.0
        %v332 = vmul.f32 %v329, 0.5
        %v333 = vtanh.pop %v332
        %v334 = vmul.f32 %v333, 0.5
        %v335 = vadd.f32 %v334, 0.5
        %v336 = vsub.f32 %v331, %v215
        %v337 = vmul.f32 %v335, %v336
        %v338 = vadd.f32 %v215, %v337
        %s339 = scalar_lea.vmem [#allocation5], 256
        %v340 = vld [vmem:[%s339] sm:$0xff]
        %v341 = vld [vmem:[%s339 + $0x8] sm:$0xff]
        %v342 = vld [vmem:[%s339 + $0x10] sm:$0xff]
        %v343 = vld [vmem:[%s339 + $0x18] sm:$0xff]
        %v344 = vld [vmem:[%s339 + $0x20] sm:$0xff]
        %v345 = vld [vmem:[%s339 + $0x28] sm:$0xff]
        %v346 = vld [vmem:[%s339 + $0x30] sm:$0xff]
        %v347 = vld [vmem:[%s339 + $0x38] sm:$0xff]
        %v348 = vld [vmem:[%s339 + $0x40] sm:$0xff]
        %v349 = vld [vmem:[%s339 + $0x48] sm:$0xff]
        %v350 = vld [vmem:[%s339 + $0x50] sm:$0xff]
        %v351 = vld [vmem:[%s339 + $0x58] sm:$0xff]
        %v352 = vld [vmem:[%s339 + $0x60] sm:$0xff]
        %v353 = vld [vmem:[%s339 + $0x68] sm:$0xff]
        %v354 = vld [vmem:[%s339 + $0x70] sm:$0xff]
        %v355 = vld [vmem:[%s339 + $0x78] sm:$0xff]
        %v356 = vld [vmem:[%s339 + $0x80] sm:$0xff]
        %v357 = vld [vmem:[%s339 + $0x88] sm:$0xff]
        %v358 = vld [vmem:[%s339 + $0x90] sm:$0xff]
        %v359 = vld [vmem:[%s339 + $0x98] sm:$0xff]
        %v360 = vld [vmem:[%s339 + $0xa0] sm:$0xff]
        %v361 = vld [vmem:[%s339 + $0xa8] sm:$0xff]
        %v362 = vld [vmem:[%s339 + $0xb0] sm:$0xff]
        %v363 = vld [vmem:[%s339 + $0xb8] sm:$0xff]
        %v364 = vld [vmem:[%s339 + $0xc0] sm:$0xff]
        %v365 = vld [vmem:[%s339 + $0xc8] sm:$0xff]
        %v366 = vld [vmem:[%s339 + $0xd0] sm:$0xff]
        %v367 = vld [vmem:[%s339 + $0xd8] sm:$0xff]
        %v368 = vld [vmem:[%s339 + $0xe0] sm:$0xff]
        %v369 = vld [vmem:[%s339 + $0xe8] sm:$0xff]
        %v370 = vld [vmem:[%s339 + $0xf0] sm:$0xff]
        %v371 = vld [vmem:[%s339 + $0xf8] sm:$0xff]
        %s372 = scalar_lea.vmem [#allocation7], 2
        %v373 = vld [vmem:[%s372] sm:$0x3]
        %v375 = vlaneseq
        %v376 = vshrl.u32 %v375, 7
        %v377 = vsub.s32 0, %v376
        %v378 = vrot.slane %v373, %v377
        %v379 = vlaneseq
        %v380 = vshrl.u32 %v379, 7
        %v381 = vsub.s32 1, %v380
        %v382 = vrot.slane %v373, %v381
        %385 = vmatprep.subr.mxu0 %v371
        %386 = vmatpush1.msra.mxu0 %v370
        %387 = vmatprep.subr.mxu0 %v369
        %388 = vmatpush1.msra.mxu0 %v368
        %389 = vmatprep.subr.mxu0 %v367
        %390 = vmatpush1.msra.mxu0 %v366
        %391 = vmatprep.subr.mxu0 %v365
        %392 = vmatpush1.msra.mxu0 %v364
        %393 = vmatprep.subr.mxu0 %v363
        %394 = vmatpush1.msra.mxu0 %v362
        %395 = vmatprep.subr.mxu0 %v361
        %396 = vmatpush1.msra.mxu0 %v360
        %397 = vmatprep.subr.mxu0 %v359
        %398 = vmatpush1.msra.mxu0 %v358
        %399 = vmatprep.subr.mxu0 %v357
        %400 = vmatpush1.msra.mxu0 %v356
        %401 = vmatprep.subr.mxu0 %v355
        %402 = vmatpush1.msra.mxu0 %v354
        %403 = vmatprep.subr.mxu0 %v353
        %404 = vmatpush1.msra.mxu0 %v352
        %405 = vmatprep.subr.mxu0 %v351
        %406 = vmatpush1.msra.mxu0 %v350
        %407 = vmatprep.subr.mxu0 %v349
        %408 = vmatpush1.msra.mxu0 %v348
        %409 = vmatprep.subr.mxu0 %v347
        %410 = vmatpush1.msra.mxu0 %v346
        %411 = vmatprep.subr.mxu0 %v345
        %412 = vmatpush1.msra.mxu0 %v344
        %413 = vmatprep.subr.mxu0 %v343
        %414 = vmatpush1.msra.mxu0 %v342
        %415 = vmatprep.subr.mxu0 %v341
        %416 = vmatpush1.msra.mxu0 %v340
        %417 = vmatprep.subr.mxu0 0.0
        %418 = vmatpush2.msra.mxu0 0.0
        %419 = vmatprep.subr.mxu0 0.0
        %420 = vmatpush2.msra.mxu0 0.0
        %421 = vmatprep.subr.mxu0 0.0
        %422 = vmatpush2.msra.mxu0 0.0
        %423 = vmatprep.subr.mxu0 0.0
        %424 = vmatpush2.msra.mxu0 0.0
        %425 = vmatprep.subr.mxu0 0.0
        %426 = vmatpush2.msra.mxu0 0.0
        %427 = vmatprep.subr.mxu0 0.0
        %428 = vmatpush2.msra.mxu0 0.0
        %429 = vmatprep.subr.mxu0 0.0
        %430 = vmatpush2.msra.mxu0 0.0
        %431 = vmatprep.subr.mxu0 0.0
        %432 = vmatpush2.msra.mxu0 0.0
        %433 = vmatprep.subr.mxu0 0.0
        %434 = vmatpush2.msra.mxu0 0.0
        %435 = vmatprep.subr.mxu0 0.0
        %436 = vmatpush2.msra.mxu0 0.0
        %437 = vmatprep.subr.mxu0 0.0
        %438 = vmatpush2.msra.mxu0 0.0
        %439 = vmatprep.subr.mxu0 0.0
        %440 = vmatpush2.msra.mxu0 0.0
        %441 = vmatprep.subr.mxu0 0.0
        %442 = vmatpush2.msra.mxu0 0.0
        %443 = vmatprep.subr.mxu0 0.0
        %444 = vmatpush2.msra.mxu0 0.0
        %445 = vmatprep.subr.mxu0 0.0
        %446 = vmatpush2.msra.mxu0 0.0
        %447 = vmatprep.subr.mxu0 0.0
        %448 = vmatpush2.msra.mxu0 0.0
        %449 = vmatprep.mubr.f32.mxu0 0.0
        %450 = vmatmul.mubr.f32.gmra.mxu0 %v338
        %v451 = vpop.f32.mrf.mxu0
        %v452 = vadd.f32 %v378, %v451
        %v453 = vpop.f32.mrf.mxu0
        %v454 = vadd.f32 %v382, %v453
        %455 = vdwg.mxu0
        %v456 = vmax.f32 %v452, 0.0
        %v457 = vmul.f32 %v454, 0.5
        %v458 = vtanh.pop %v457
        %v459 = vmul.f32 %v458, 0.5
        %v460 = vadd.f32 %v459, 0.5
        %v461 = vsub.f32 %v456, %v338
        %v462 = vmul.f32 %v460, %v461
        %v463 = vadd.f32 %v338, %v462
        %464 = vst [vmem:[%s214] sm:$0xff] %v463
        %s465 = sand.u32 %s97, 1
        %s466 = scalar_lea.sflag [#allocation4], %s465
        %s467 = sand.u32 %s97, 1
        %s468 = smul.addr %s467, 8
        %s469 = scalar_lea.vmem [#allocation8], %s468
        // Predicated region
        $region45: #{tpu_custom_call.1} parent=31 // pred_check
          %p470 = pneg %p107
        $region46: #{tpu_custom_call.1} parent=31 // pred_check_branch
          %472 = sbr.rel (%p470) target = $region48
        $region47: #{tpu_custom_call.1} parent=31 // pred_region
          %s474 = ssub.s32 128, 128
          %475 = vsyncadd %s466, %s474
          %s476 = smul.addr %s21, 128
          %s477 = scalar_lea.hbm %s3, %s476
          %s479 = sshll.u32 %s469, 4
          %s480 = int_to_ptr.vmem [resolvable:$true] %s479
          %482 = dma.vmem_to_hbm [thread:$0]  %s480, 128, %s477, %s466
        $region48: #{tpu_custom_call.1} parent=31 // pred_fallthru
          _
      $region32: #{tpu_custom_call.1} parent=5 // pred_fallthru
        _
      %p483 = scmp.le.s32.totalorder 2, %s16
      // Predicated region
      $region49: #{tpu_custom_call.1} parent=5 // pred_check
        %p484 = pneg %p483
      $region50: #{tpu_custom_call.1} parent=5 // pred_check_branch
        %486 = sbr.rel (%p484) target = $region52
      $region51: #{tpu_custom_call.1} parent=5 // pred_region
        %s487 = ssub.s32 %s16, 2
        // Predicated region
        $region53: #{tpu_custom_call.1} parent=51 // pred_check
          %p488 = pneg %p113
        $region54: #{tpu_custom_call.1} parent=51 // pred_check_branch
          %490 = sbr.rel (%p488) target = $region56
        $region55: #{tpu_custom_call.1} parent=51 // pred_region
          %s491 = sand.u32 %s98, 1
          %s492 = scalar_lea.sflag [#allocation4], %s491
          %s493 = sand.u32 %s98, 1
          %s494 = smul.addr %s493, 8
          %s495 = scalar_lea.vmem [#allocation8], %s494
          %496 = dma.done %s492, 128
        $region56: #{tpu_custom_call.1} parent=51 // pred_fallthru
          _
      $region52: #{tpu_custom_call.1} parent=5 // pred_fallthru
        _
    $region6: #{tpu_custom_call.1} parent=1 // loop_footer
      %s20 = sadd.s32 1, %s16
    $region7: #{tpu_custom_call.1} parent=1 // loop_footer_branch
      %15 = sbr.rel target = $region3
    $region8: #{tpu_custom_call.1} parent=1 // loop_exit
      _
    %497 = vsyncpa [#allocation3], 1
    %s498 = scalar_lea.sflag [#allocation3], 1
    %499 = vsyncpa %s498, 1
    %500 = vsyncpa [#allocation6], 1
    %501 = vsyncpa [#allocation4], 1
    %s502 = scalar_lea.sflag [#allocation4], 1
    %503 = vsyncpa %s502, 1

</llo_original>
